<compile_context>
chip_gen: v7x
topology: tpu7x:2x2x1
jax: 0.10.0
libtpu: 0.0.40
codegen_flags: <defaults>
</compile_context>

<pallas_src>
import jax
import jax.numpy as jnp
from jax import lax
from jax.experimental import pallas as pl
from jax.experimental.pallas import tpu as pltpu

LN_EPS = 1e-5  # nn.LayerNorm default


# ----------------------------- kernels --------------------------------------

def _hidden_kernel(x_ref, wdt_ref, bd_ref, g_ref, b_ref, h_ref):
    # x_ref:   (tm, E) bf16  row tile of flattened features ((t, b)-ordered rows)
    # wdt_ref: (E, E)  bf16  dense weight, pre-transposed to (in, out)
    # bd_ref:  (1, E)  f32   dense bias
    # g_ref:   (1, E)  f32   LayerNorm gamma
    # b_ref:   (1, E)  f32   LayerNorm beta
    # h_ref:   (tm, E) bf16  post-LayerNorm hidden (output)
    h = jnp.dot(x_ref[...], wdt_ref[...], preferred_element_type=jnp.float32)
    h = h + bd_ref[...]
    h = jnp.maximum(h, 0.0)                                  # ReLU
    # LayerNorm over E: single-pass statistics in f32.
    inv_e = 1.0 / h.shape[-1]
    s = jnp.sum(h, axis=-1, keepdims=True)
    sq = jnp.sum(h * h, axis=-1, keepdims=True)
    mu = s * inv_e
    var = jnp.maximum(sq * inv_e - mu * mu, 0.0)             # guard cancellation
    h = (h - mu) * lax.rsqrt(var + LN_EPS)
    h = h * g_ref[...] + b_ref[...]
    h_ref[...] = h.astype(h_ref.dtype)


def _proj_kernel(h_ref, wot_ref, o_ref):
    # h_ref:   (tm, E)  bf16  post-LN hidden row tile
    # wot_ref: (E, tn)  bf16  projection weight tile, pre-transposed to (in, out)
    # o_ref:   (tm, tn)       logits tile (f32 MXU accumulation, cast on store)
    o_ref[...] = jnp.dot(h_ref[...], wot_ref[...],
                         preferred_element_type=jnp.float32).astype(o_ref.dtype)


# ----------------------------- wrapper ---------------------------------------

def prepare_params(params):
    """One-time weight prep (bf16 cast + transpose).  Keep the result persistent
    across calls so no per-call XLA cast/transpose of the large vocab matrix."""
    E = params["dense_w"].shape[1]
    return {
        "wd_t": jnp.asarray(params["dense_w"]).T.astype(jnp.bfloat16),  # (E_in, E_out)
        "bd": jnp.asarray(params["dense_b"]).reshape(1, E).astype(jnp.float32),
        "g": jnp.asarray(params["ln_g"]).reshape(1, E).astype(jnp.float32),
        "b": jnp.asarray(params["ln_b"]).reshape(1, E).astype(jnp.float32),
        "wo_t": jnp.asarray(params["out_w"]).T.astype(jnp.bfloat16),    # (E, V)
    }


def _tile(dim, tile):
    # Single full-extent block if it fits (always a legal block shape);
    # otherwise use `tile` (callers keep it 8/128-aligned) with a masked
    # partial trailing block.
    return dim if dim <= tile else tile


def roberta_lm_head(features, prepared, *, tm_hidden=512, tm_proj=1024,
                    tn_vocab=1024, out_dtype=jnp.float32, masked_tokens=None):
    """features: [B, T, E] float32.  Returns logits [T, B, V] (module's transpose(0,1))."""
    # TODO(synk): masked_tokens gather (features[masked_tokens, :]) not implemented.
    assert masked_tokens is None

    B, T, E = features.shape
    wd_t, bd, g, b, wo_t = (prepared["wd_t"], prepared["bd"], prepared["g"],
                            prepared["b"], prepared["wo_t"])
    V = wo_t.shape[1]

    # Fold the final transpose(0, 1) into the row ordering: rows are (t, b),
    # so the kernel writes logits already in [T, B, V] layout.  Transposing the
    # small features tensor is ~V/E times cheaper than transposing the logits.
    N = T * B
    x2d = features.astype(jnp.bfloat16).transpose(1, 0, 2).reshape(N, E)

    # ---- kernel A: dense -> ReLU -> LayerNorm ------------------------------
    tmh = _tile(N, tm_hidden)
    h = pl.pallas_call(
        _hidden_kernel,
        out_shape=jax.ShapeDtypeStruct((N, E), jnp.bfloat16),
        grid_spec=pltpu.PrefetchScalarGridSpec(
            num_scalar_prefetch=0,
            grid=(pl.cdiv(N, tmh),),
            in_specs=[
                pl.BlockSpec((tmh, E), lambda i: (i, 0)),   # x row tile
                pl.BlockSpec((E, E),   lambda i: (0, 0)),   # dense weight (in,out)
                pl.BlockSpec((1, E),   lambda i: (0, 0)),   # dense bias
                pl.BlockSpec((1, E),   lambda i: (0, 0)),   # ln gamma
                pl.BlockSpec((1, E),   lambda i: (0, 0)),   # ln beta
            ],
            out_specs=pl.BlockSpec((tmh, E), lambda i: (i, 0)),
        ),
        compiler_params=pltpu.CompilerParams(
            dimension_semantics=("parallel",),
        ),
    )(x2d, wd_t, bd, g, b)

    # ---- kernel B: vocab projection ----------------------------------------
    # Vocab axis OUTER: each (E, tn) weight tile is DMA'd exactly once total.
    # Row axis inner: with a single row tile (common LM-head case) h is fetched
    # once and stays VMEM-resident.  Output blocks are disjoint and no scratch
    # is carried, so both axes are "parallel" (megacore-friendly on v7x).
    tmp = _tile(N, tm_proj)
    tnp = _tile(V, tn_vocab)
    out2d = pl.pallas_call(
        _proj_kernel,
        out_shape=jax.ShapeDtypeStruct((N, V), out_dtype),
        grid_spec=pltpu.PrefetchScalarGridSpec(
            num_scalar_prefetch=0,
            grid=(pl.cdiv(V, tnp), pl.cdiv(N, tmp)),
            in_specs=[
                pl.BlockSpec((tmp, E), lambda j, i: (i, 0)),  # h row tile
                pl.BlockSpec((E, tnp), lambda j, i: (0, j)),  # weight tile
            ],
            out_specs=pl.BlockSpec((tmp, tnp), lambda j, i: (i, j)),
        ),
        compiler_params=pltpu.CompilerParams(
            dimension_semantics=("parallel", "parallel"),
        ),
    )(h, wo_t)

    # Rows are (t, b)-ordered -> pure-view reshape to [T, B, V]; no slicing.
    return out2d.reshape(T, B, V)


# ----------------------------- test harness ----------------------------------

def init_params(key, embed_dim, output_dim):
    k1, k2, k3 = jax.random.split(key, 3)
    lim = 1.0 / jnp.sqrt(embed_dim)
    return {
        "dense_w": jax.random.uniform(k1, (embed_dim, embed_dim),
                                      jnp.float32, -lim, lim),
        "dense_b": jax.random.uniform(k2, (embed_dim,), jnp.float32, -lim, lim),
        "ln_g": jnp.ones((embed_dim,), jnp.float32),
        "ln_b": jnp.zeros((embed_dim,), jnp.float32),
        "out_w": jax.random.uniform(k3, (output_dim, embed_dim),
                                    jnp.float32, -lim, lim),
    }


def _reference(features, params):
    x = features @ params["dense_w"].T + params["dense_b"]
    x = jnp.maximum(x, 0.0)
    mu = jnp.mean(x, axis=-1, keepdims=True)
    var = jnp.mean((x - mu) ** 2, axis=-1, keepdims=True)
    x = (x - mu) * lax.rsqrt(var + LN_EPS)
    x = x * params["ln_g"] + params["ln_b"]
    x = x @ params["out_w"].T
    return jnp.transpose(x, (1, 0, 2))


if __name__ == "__main__":
    key = jax.random.PRNGKey(0)
    kx, kp, kx2, kp2 = jax.random.split(key, 4)

    # --- config 1: divisible shapes ------------------------------------------
    B, T, E, V = 2, 8, 32, 256
    features = jax.random.normal(kx, (B, T, E), jnp.float32)
    params = init_params(kp, E, V)
    prepared = prepare_params(params)
    ref = _reference(features, params)

    # Small tiles: kernel A grid (2,), kernel B grid (2 vocab x 2 row) tiles.
    out_small = jax.block_until_ready(
        roberta_lm_head(features, prepared, tm_hidden=8, tm_proj=8, tn_vocab=128))
    assert out_small.shape == (T, B, V), out_small.shape
    assert jnp.allclose(out_small, ref, atol=5e-2, rtol=5e-2), \
        float(jnp.max(jnp.abs(out_small - ref)))

    # Default (production-style) tiles -> single-tile grids, VMEM-resident h.
    out_def = jax.block_until_ready(roberta_lm_head(features, prepared))
    assert out_def.shape == (T, B, V), out_def.shape
    assert jnp.allclose(out_def, ref, atol=5e-2, rtol=5e-2), \
        float(jnp.max(jnp.abs(out_def - ref)))

    # bf16-logits path (halves the dominant logits HBM writeback).
    out_bf16 = jax.block_until_ready(
        roberta_lm_head(features, prepared, out_dtype=jnp.bfloat16))
    assert out_bf16.dtype == jnp.bfloat16
    assert jnp.allclose(out_bf16.astype(jnp.float32), ref, atol=1e-1, rtol=1e-1)

    # --- config 2: non-divisible N and V -> masked partial trailing blocks ----
    B2, T2, E2, V2 = 2, 5, 32, 200
    features2 = jax.random.normal(kx2, (B2, T2, E2), jnp.float32)
    params2 = init_params(kp2, E2, V2)
    prepared2 = prepare_params(params2)
    ref2 = _reference(features2, params2)
    out2 = jax.block_until_ready(
        roberta_lm_head(features2, prepared2, tm_hidden=8, tm_proj=8, tn_vocab=128))
    assert out2.shape == (T2, B2, V2), out2.shape
    assert jnp.allclose(out2, ref2, atol=5e-2, rtol=5e-2), \
        float(jnp.max(jnp.abs(out2 - ref2)))

    print("KERNEL_OK")
</pallas_src>

<mosaic_0001>
module attributes {stable_mosaic.version = 11 : i64} {
  func.func @_hidden_kernel(%arg0: i32, %arg1: memref<8x32xbf16, #tpu.memory_space<vmem>>, %arg2: memref<32x32xbf16, #tpu.memory_space<vmem>>, %arg3: memref<1x32xf32, #tpu.memory_space<vmem>>, %arg4: memref<1x32xf32, #tpu.memory_space<vmem>>, %arg5: memref<1x32xf32, #tpu.memory_space<vmem>>, %arg6: memref<8x32xbf16, #tpu.memory_space<vmem>>) attributes {dimension_semantics = [#tpu.dimension_semantics<parallel>], iteration_bounds = array<i64: 2>, scalar_prefetch = 0 : i64, scratch_operands = 0 : i64, tpu.core_type = #tpu.core_type<tc>, window_params = [{transform_indices = @transform_0, window_bounds = array<i64: 8, 32>}, {pipeline_mode = #tpu.pipeline_mode<synchronous>, transform_indices = @transform_1, window_bounds = array<i64: 32, 32>}, {pipeline_mode = #tpu.pipeline_mode<synchronous>, transform_indices = @transform_2, window_bounds = array<i64: 1, 32>}, {pipeline_mode = #tpu.pipeline_mode<synchronous>, transform_indices = @transform_3, window_bounds = array<i64: 1, 32>}, {pipeline_mode = #tpu.pipeline_mode<synchronous>, transform_indices = @transform_4, window_bounds = array<i64: 1, 32>}, {transform_indices = @transform_5, window_bounds = array<i64: 8, 32>}]} {
    %c0 = arith.constant 0 : index
    %c0_0 = arith.constant 0 : index
    %0 = vector.load %arg1[%c0, %c0_0] : memref<8x32xbf16, #tpu.memory_space<vmem>>, vector<8x32xbf16>
    %c0_1 = arith.constant 0 : index
    %c0_2 = arith.constant 0 : index
    %1 = vector.load %arg2[%c0_1, %c0_2] : memref<32x32xbf16, #tpu.memory_space<vmem>>, vector<32x32xbf16>
    %cst = arith.constant dense<0.000000e+00> : vector<8x32xf32>
    %2 = tpu.matmul %0, %1, %cst {dimension_numbers = #tpu.dot_dimension_numbers<[1], [0], [0], [1], [0, 0, 1, 1], [], []>} : vector<8x32xbf16>, vector<32x32xbf16>, vector<8x32xf32> -> vector<8x32xf32>
    %c0_3 = arith.constant 0 : index
    %c0_4 = arith.constant 0 : index
    %3 = vector.load %arg3[%c0_3, %c0_4] : memref<1x32xf32, #tpu.memory_space<vmem>>, vector<1x32xf32>
    %4 = vector.broadcast %3 : vector<1x32xf32> to vector<8x32xf32>
    %5 = arith.addf %2, %4 : vector<8x32xf32>
    %cst_5 = arith.constant 0.000000e+00 : f32
    %6 = vector.broadcast %cst_5 : f32 to vector<8x32xf32>
    %7 = arith.maximumf %5, %6 : vector<8x32xf32>
    %cst_6 = arith.constant dense<0.000000e+00> : vector<8xf32>
    %8 = vector.multi_reduction <add>, %7, %cst_6 [1] : vector<8x32xf32> to vector<8xf32>
    %9 = vector.shape_cast %8 : vector<8xf32> to vector<8x1xf32>
    %10 = arith.mulf %7, %7 : vector<8x32xf32>
    %cst_7 = arith.constant dense<0.000000e+00> : vector<8xf32>
    %11 = vector.multi_reduction <add>, %10, %cst_7 [1] : vector<8x32xf32> to vector<8xf32>
    %12 = vector.shape_cast %11 : vector<8xf32> to vector<8x1xf32>
    %cst_8 = arith.constant 3.125000e-02 : f32
    %13 = vector.broadcast %cst_8 : f32 to vector<8x1xf32>
    %14 = arith.mulf %9, %13 : vector<8x1xf32>
    %cst_9 = arith.constant 3.125000e-02 : f32
    %15 = vector.broadcast %cst_9 : f32 to vector<8x1xf32>
    %16 = arith.mulf %12, %15 : vector<8x1xf32>
    %17 = arith.mulf %14, %14 : vector<8x1xf32>
    %18 = arith.subf %16, %17 : vector<8x1xf32>
    %cst_10 = arith.constant 0.000000e+00 : f32
    %19 = vector.broadcast %cst_10 : f32 to vector<8x1xf32>
    %20 = arith.maximumf %18, %19 : vector<8x1xf32>
    %21 = vector.broadcast %14 : vector<8x1xf32> to vector<8x32xf32>
    %22 = arith.subf %7, %21 : vector<8x32xf32>
    %cst_11 = arith.constant 9.99999974E-6 : f32
    %23 = vector.broadcast %cst_11 : f32 to vector<8x1xf32>
    %24 = arith.addf %20, %23 : vector<8x1xf32>
    %25 = math.rsqrt %24 : vector<8x1xf32>
    %26 = vector.broadcast %25 : vector<8x1xf32> to vector<8x32xf32>
    %27 = arith.mulf %22, %26 : vector<8x32xf32>
    %c0_12 = arith.constant 0 : index
    %c0_13 = arith.constant 0 : index
    %28 = vector.load %arg4[%c0_12, %c0_13] : memref<1x32xf32, #tpu.memory_space<vmem>>, vector<1x32xf32>
    %29 = vector.broadcast %28 : vector<1x32xf32> to vector<8x32xf32>
    %30 = arith.mulf %27, %29 : vector<8x32xf32>
    %c0_14 = arith.constant 0 : index
    %c0_15 = arith.constant 0 : index
    %31 = vector.load %arg5[%c0_14, %c0_15] : memref<1x32xf32, #tpu.memory_space<vmem>>, vector<1x32xf32>
    %32 = vector.broadcast %31 : vector<1x32xf32> to vector<8x32xf32>
    %33 = arith.addf %30, %32 : vector<8x32xf32>
    %34 = arith.truncf %33 : vector<8x32xf32> to vector<8x32xbf16>
    %c0_16 = arith.constant 0 : index
    %c0_17 = arith.constant 0 : index
    %35 = vector.load %arg6[%c0_16, %c0_17] : memref<8x32xbf16, #tpu.memory_space<vmem>>, vector<8x32xbf16>
    tpu.vector_store %arg6[%c0_16, %c0_17], %34 {strides = array<i32>} : memref<8x32xbf16, #tpu.memory_space<vmem>>, vector<8x32xbf16>,
    return
  }
  func.func @transform_0(%arg0: i32) -> (i32, i32) {
    %c0_i32 = arith.constant 0 : i32
    %c0_i32_0 = arith.constant 0 : i32
    return %arg0, %c0_i32 : i32, i32
  }
  func.func @transform_1(%arg0: i32) -> (i32, i32) {
    %c0_i32 = arith.constant 0 : i32
    %c0_i32_0 = arith.constant 0 : i32
    %c0_i32_1 = arith.constant 0 : i32
    return %c0_i32, %c0_i32_0 : i32, i32
  }
  func.func @transform_2(%arg0: i32) -> (i32, i32) {
    %c0_i32 = arith.constant 0 : i32
    %c0_i32_0 = arith.constant 0 : i32
    %c0_i32_1 = arith.constant 0 : i32
    return %c0_i32, %c0_i32_0 : i32, i32
  }
  func.func @transform_3(%arg0: i32) -> (i32, i32) {
    %c0_i32 = arith.constant 0 : i32
    %c0_i32_0 = arith.constant 0 : i32
    %c0_i32_1 = arith.constant 0 : i32
    return %c0_i32, %c0_i32_0 : i32, i32
  }
  func.func @transform_4(%arg0: i32) -> (i32, i32) {
    %c0_i32 = arith.constant 0 : i32
    %c0_i32_0 = arith.constant 0 : i32
    %c0_i32_1 = arith.constant 0 : i32
    return %c0_i32, %c0_i32_0 : i32, i32
  }
  func.func @transform_5(%arg0: i32) -> (i32, i32) {
    %c0_i32 = arith.constant 0 : i32
    %c0_i32_0 = arith.constant 0 : i32
    return %arg0, %c0_i32 : i32, i32
  }
}

</mosaic_0001>

<llo_original>
// kernel: tpu_custom_call.1
$region0: #{tpu_custom_call.1}
  #allocation0 [shape = 'u32[]', space=smem, size = 0x4, offset = 0x4, fixed_abs, tag = 'smem constant byte address 0x4 - core index']
  #allocation1 [shape = 'u32[144,128]{1,0:T(1,128)}', space=vmem, size = 0x12000, scoped, tag = 'internal scratch']
  %s0 = inlined_call_operand.hbm [shape: bf16[16,32], index: 0, kind: input, shape index: {}]
  %s1 = inlined_call_operand.hbm [shape: bf16[32,32], index: 1, kind: input, shape index: {}]
  %s2 = inlined_call_operand.vmem [shape: f32[1,32], index: 2, kind: input, shape index: {}]
  %s3 = inlined_call_operand.vmem [shape: f32[1,32], index: 3, kind: input, shape index: {}]
  %s4 = inlined_call_operand.vmem [shape: f32[1,32], index: 4, kind: input, shape index: {}]
  %s5 = inlined_call_operand.hbm [shape: bf16[16,32], index: 5, kind: output, shape index: {}]
  %s6 = sld [smem:[#allocation0]]
  $region61: #{tpu_custom_call.1} parent=0
    _
  %s8 = ssub.s32 1, %s6
  %s9 = scalar_select 0, %s8, %s6
  $region1: #{tpu_custom_call.1} parent=0
    #allocation2 [shape = 'u8[4096]{0}', space=vmem, size = 0x1000, scoped, tag = 'input window, operand 0']
    #allocation3 [shape = 's32[2]{0}', space=sflag, size = 0x8, scoped, tag = 'scoped memory for tpu_custom_call.1']
    #allocation4 [shape = 's32[2]{0}', space=sflag, size = 0x8, scoped, tag = 'scoped memory for tpu_custom_call.1']
    #allocation5 [shape = 'u8[8192]{0}', space=vmem, size = 0x2000, scoped, tag = 'input window, operand 1, single buffered']
    #allocation6 [shape = 's32[1]{0}', space=sflag, size = 0x4, scoped, tag = 'scoped memory for tpu_custom_call.1']
    #allocation7 [shape = 'u8[4096]{0}', space=vmem, size = 0x1000, scoped, tag = 'output window, operand 0']
    %10 = vsyncpa [#allocation3], 0
    %s11 = scalar_lea.sflag [#allocation3], 1
    %12 = vsyncpa %s11, 0
    %13 = vsyncpa [#allocation6], 0
    %14 = vsyncpa [#allocation4], 0
    %s15 = scalar_lea.sflag [#allocation4], 1
    %16 = vsyncpa %s15, 0
    loop: start=0, step=1, limit=4
    $region2: #{tpu_custom_call.1} parent=1 // loop_pre_header
      _
    $region3: #{tpu_custom_call.1} parent=1 // loop_header
      %s18 = sphi 0, %s22
      %p19 = scmp.ge.s32.totalorder %s18, 4
      %s28 = sphi 0, %s30
      %s31 = sphi 0, %s28
      %s32 = sphi 0, %s31
      %s48 = sphi 0, %s32
      %s52 = sphi 0, %s52
      %s54 = sphi 0, %s52
      %s55 = sphi 0, %s54
      %s69 = sphi 0, %s55
      %s73 = sphi 0, %s73
      %s75 = sphi 0, %s73
      %s76 = sphi 0, %s75
      %s90 = sphi 0, %s76
      %s94 = sphi 0, %s94
      %s96 = sphi 0, %s94
      %s97 = sphi 0, %s96
      %s111 = sphi 0, %s97
      %s115 = sphi 0, %s115
      %s117 = sphi 0, %s115
      %s118 = sphi 0, %s117
      %s132 = sphi 0, %s118
      %s138 = sphi 0, %s140
      %s141 = sphi 0, %s138
      %s142 = sphi 0, %s141
      %s158 = sphi 0, %s142
    $region4: #{tpu_custom_call.1} parent=1 // loop_header_branch
      %21 = sbr.rel (%p19) target = $region8
    $region5: #{tpu_custom_call.1} parent=1 // loop_body
      %s23 = ssub.s32 %s18, 1
      %s24 = ssub.s32 %s18, 2
      %s25 = sadd.s32 %s18, 1
      %s26 = ssub.s32 %s18, %s25
      %p27 = scmp.eq.s32.totalorder %s26, 0
      %s29 = sadd.s32 %s28, 1
      %s30 = scalar_select %p27, %s28, %s29
      %p33 = pneg %p27
      %p34 = scmp.eq.s32.totalorder %s18, 1
      %p35 = por %p33, %p34
      %p36 = scmp.ne.s32.totalorder %s28, %s31
      %p37 = scmp.eq.s32.totalorder %s18, 0
      %p38 = por %p36, %p37
      %p39 = scmp.ne.s32.totalorder %s28, %s31
      %p40 = scmp.eq.s32.totalorder %s23, 1
      %p41 = por %p39, %p40
      %p42 = scmp.ne.s32.totalorder %s31, %s32
      %p43 = scmp.eq.s32.totalorder %s23, 0
      %p44 = por %p42, %p43
      %p45 = scmp.ne.s32.totalorder %s31, %s32
      %p46 = scmp.eq.s32.totalorder %s24, 1
      %p47 = por %p45, %p46
      %p49 = scmp.ne.s32.totalorder %s32, %s48
      %p50 = scmp.eq.s32.totalorder %s24, 0
      %p51 = por %p49, %p50
      %s53 = sadd.s32 %s52, 1
      %p56 = scmp.eq.s32.totalorder %s18, 1
      %p57 = scmp.ne.s32.totalorder %s52, %s54
      %p58 = scmp.eq.s32.totalorder %s18, 0
      %p59 = por %p57, %p58
      %p60 = scmp.ne.s32.totalorder %s52, %s54
      %p61 = scmp.eq.s32.totalorder %s23, 1
      %p62 = por %p60, %p61
      %p63 = scmp.ne.s32.totalorder %s54, %s55
      %p64 = scmp.eq.s32.totalorder %s23, 0
      %p65 = por %p63, %p64
      %p66 = scmp.ne.s32.totalorder %s54, %s55
      %p67 = scmp.eq.s32.totalorder %s24, 1
      %p68 = por %p66, %p67
      %p70 = scmp.ne.s32.totalorder %s55, %s69
      %p71 = scmp.eq.s32.totalorder %s24, 0
      %p72 = por %p70, %p71
      %s74 = sadd.s32 %s73, 1
      %p77 = scmp.eq.s32.totalorder %s18, 1
      %p78 = scmp.ne.s32.totalorder %s73, %s75
      %p79 = scmp.eq.s32.totalorder %s18, 0
      %p80 = por %p78, %p79
      %p81 = scmp.ne.s32.totalorder %s73, %s75
      %p82 = scmp.eq.s32.totalorder %s23, 1
      %p83 = por %p81, %p82
      %p84 = scmp.ne.s32.totalorder %s75, %s76
      %p85 = scmp.eq.s32.totalorder %s23, 0
      %p86 = por %p84, %p85
      %p87 = scmp.ne.s32.totalorder %s75, %s76
      %p88 = scmp.eq.s32.totalorder %s24, 1
      %p89 = por %p87, %p88
      %p91 = scmp.ne.s32.totalorder %s76, %s90
      %p92 = scmp.eq.s32.totalorder %s24, 0
      %p93 = por %p91, %p92
      %s95 = sadd.s32 %s94, 1
      %p98 = scmp.eq.s32.totalorder %s18, 1
      %p99 = scmp.ne.s32.totalorder %s94, %s96
      %p100 = scmp.eq.s32.totalorder %s18, 0
      %p101 = por %p99, %p100
      %p102 = scmp.ne.s32.totalorder %s94, %s96
      %p103 = scmp.eq.s32.totalorder %s23, 1
      %p104 = por %p102, %p103
      %p105 = scmp.ne.s32.totalorder %s96, %s97
      %p106 = scmp.eq.s32.totalorder %s23, 0
      %p107 = por %p105, %p106
      %p108 = scmp.ne.s32.totalorder %s96, %s97
      %p109 = scmp.eq.s32.totalorder %s24, 1
      %p110 = por %p108, %p109
      %p112 = scmp.ne.s32.totalorder %s97, %s111
      %p113 = scmp.eq.s32.totalorder %s24, 0
      %p114 = por %p112, %p113
      %s116 = sadd.s32 %s115, 1
      %p119 = scmp.eq.s32.totalorder %s18, 1
      %p120 = scmp.ne.s32.totalorder %s115, %s117
      %p121 = scmp.eq.s32.totalorder %s18, 0
      %p122 = por %p120, %p121
      %p123 = scmp.ne.s32.totalorder %s115, %s117
      %p124 = scmp.eq.s32.totalorder %s23, 1
      %p125 = por %p123, %p124
      %p126 = scmp.ne.s32.totalorder %s117, %s118
      %p127 = scmp.eq.s32.totalorder %s23, 0
      %p128 = por %p126, %p127
      %p129 = scmp.ne.s32.totalorder %s117, %s118
      %p130 = scmp.eq.s32.totalorder %s24, 1
      %p131 = por %p129, %p130
      %p133 = scmp.ne.s32.totalorder %s118, %s132
      %p134 = scmp.eq.s32.totalorder %s24, 0
      %p135 = por %p133, %p134
      %s136 = ssub.s32 %s18, %s25
      %p137 = scmp.eq.s32.totalorder %s136, 0
      %s139 = sadd.s32 %s138, 1
      %s140 = scalar_select %p137, %s138, %s139
      %p143 = pneg %p137
      %p144 = scmp.eq.s32.totalorder %s18, 1
      %p145 = por %p143, %p144
      %p146 = scmp.ne.s32.totalorder %s138, %s141
      %p147 = scmp.eq.s32.totalorder %s18, 0
      %p148 = por %p146, %p147
      %p149 = scmp.ne.s32.totalorder %s138, %s141
      %p150 = scmp.eq.s32.totalorder %s23, 1
      %p151 = por %p149, %p150
      %p152 = scmp.ne.s32.totalorder %s141, %s142
      %p153 = scmp.eq.s32.totalorder %s23, 0
      %p154 = por %p152, %p153
      %p155 = scmp.ne.s32.totalorder %s141, %s142
      %p156 = scmp.eq.s32.totalorder %s24, 1
      %p157 = por %p155, %p156
      %p159 = scmp.ne.s32.totalorder %s142, %s158
      %p160 = scmp.eq.s32.totalorder %s24, 0
      %p161 = por %p159, %p160
      %p162 = scmp.le.s32.totalorder 1, %s18
      %p163 = scmp.lt.s32.totalorder %s18, 3
      %p164 = pnand %p162, %p163
      %p165 = pneg %p164
      // Predicated region
      $region9: #{tpu_custom_call.1} parent=5 // pred_check
        _
      $region10: #{tpu_custom_call.1} parent=5 // pred_check_branch
        %167 = sbr.rel (%p164) target = $region12
      $region11: #{tpu_custom_call.1} parent=5 // pred_region
        %s168 = ssub.s32 %s18, 1
        // Predicated region
        $region13: #{tpu_custom_call.1} parent=11 // pred_check
          %p169 = pneg %p65
        $region14: #{tpu_custom_call.1} parent=11 // pred_check_branch
          %171 = sbr.rel (%p169) target = $region16
        $region15: #{tpu_custom_call.1} parent=11 // pred_region
          %s173 = ssub.s32 256, 256
          %174 = vsyncadd [#allocation6], %s173
          %s175 = sshll.u32 [#allocation5], 4
          %s176 = int_to_ptr.vmem [resolvable:$true] %s175
          %181 = dma.hbm_to_vmem [thread:$0]  %s1, 256, %s176, [#allocation6], 64, 64, 4
        $region16: #{tpu_custom_call.1} parent=11 // pred_fallthru
          _
        // Predicated region
        $region17: #{tpu_custom_call.1} parent=11 // pred_check
          %p182 = pneg %p86
        $region18: #{tpu_custom_call.1} parent=11 // pred_check_branch
          %184 = sbr.rel (%p182) target = $region20
        $region19: #{tpu_custom_call.1} parent=11 // pred_region
          _
        $region20: #{tpu_custom_call.1} parent=11 // pred_fallthru
          _
        // Predicated region
        $region21: #{tpu_custom_call.1} parent=11 // pred_check
          %p185 = pneg %p107
        $region22: #{tpu_custom_call.1} parent=11 // pred_check_branch
          %187 = sbr.rel (%p185) target = $region24
        $region23: #{tpu_custom_call.1} parent=11 // pred_region
          _
        $region24: #{tpu_custom_call.1} parent=11 // pred_fallthru
          _
        // Predicated region
        $region25: #{tpu_custom_call.1} parent=11 // pred_check
          %p188 = pneg %p128
        $region26: #{tpu_custom_call.1} parent=11 // pred_check_branch
          %190 = sbr.rel (%p188) target = $region28
        $region27: #{tpu_custom_call.1} parent=11 // pred_region
          _
        $region28: #{tpu_custom_call.1} parent=11 // pred_fallthru
          _
      $region12: #{tpu_custom_call.1} parent=5 // pred_fallthru
        _
      %p191 = scmp.lt.s32.totalorder %s18, 2
      // Predicated region
      $region29: #{tpu_custom_call.1} parent=5 // pred_check
        %p192 = pneg %p191
      $region30: #{tpu_custom_call.1} parent=5 // pred_check_branch
        %194 = sbr.rel (%p192) target = $region32
      $region31: #{tpu_custom_call.1} parent=5 // pred_region
        // Predicated region
        $region33: #{tpu_custom_call.1} parent=31 // pred_check
          %p195 = pneg %p38
        $region34: #{tpu_custom_call.1} parent=31 // pred_check_branch
          %197 = sbr.rel (%p195) target = $region36
        $region35: #{tpu_custom_call.1} parent=31 // pred_region
          %s198 = sand.u32 %s28, 1
          %s199 = scalar_lea.sflag [#allocation3], %s198
          %s200 = sand.u32 %s28, 1
          %s201 = smul.addr %s200, 4
          %s202 = scalar_lea.vmem [#allocation2], %s201
          %s204 = ssub.s32 64, 64
          %205 = vsyncadd %s199, %s204
          %s206 = smul.addr %s18, 64
          %s207 = scalar_lea.hbm %s0, %s206
          %s209 = sshll.u32 %s202, 4
          %s210 = int_to_ptr.vmem [resolvable:$true] %s209
          %212 = dma.hbm_to_vmem [thread:$0]  %s207, 64, %s210, %s199
        $region36: #{tpu_custom_call.1} parent=31 // pred_fallthru
          _
      $region32: #{tpu_custom_call.1} parent=5 // pred_fallthru
        _
      %p213 = scmp.le.s32.totalorder 1, %s18
      %p214 = scmp.lt.s32.totalorder %s18, 3
      %p215 = pnand %p213, %p214
      %p216 = pneg %p215
      // Predicated region
      $region37: #{tpu_custom_call.1} parent=5 // pred_check
        _
      $region38: #{tpu_custom_call.1} parent=5 // pred_check_branch
        %218 = sbr.rel (%p215) target = $region40
      $region39: #{tpu_custom_call.1} parent=5 // pred_region
        %s219 = ssub.s32 %s18, 1
        %s220 = sand.u32 %s31, 1
        %s221 = scalar_lea.sflag [#allocation3], %s220
        %s222 = sand.u32 %s31, 1
        %s223 = smul.addr %s222, 4
        %s224 = scalar_lea.vmem [#allocation2], %s223
        // Predicated region
        $region41: #{tpu_custom_call.1} parent=39 // pred_check
          %p225 = pneg %p44
        $region42: #{tpu_custom_call.1} parent=39 // pred_check_branch
          %227 = sbr.rel (%p225) target = $region44
        $region43: #{tpu_custom_call.1} parent=39 // pred_region
          %228 = dma.done %s221, 64
        $region44: #{tpu_custom_call.1} parent=39 // pred_fallthru
          _
        // Predicated region
        $region45: #{tpu_custom_call.1} parent=39 // pred_check
          %p229 = pneg %p65
        $region46: #{tpu_custom_call.1} parent=39 // pred_check_branch
          %231 = sbr.rel (%p229) target = $region48
        $region47: #{tpu_custom_call.1} parent=39 // pred_region
          %232 = dma.done [#allocation6], 256
        $region48: #{tpu_custom_call.1} parent=39 // pred_fallthru
          _
        %s233 = sand.u32 %s31, 1
        %s234 = scalar_lea.sflag [#allocation3], %s233
        %s235 = sand.u32 %s31, 1
        %s236 = smul.addr %s235, 4
        %s237 = scalar_lea.vmem [#allocation2], %s236
        %p238 = pneg %p44
        %p239 = pneg %p41
        %p240 = pneg %p65
        %p241 = pneg %p62
        %p242 = pneg %p86
        %p243 = pneg %p83
        %p244 = pneg %p107
        %p245 = pneg %p104
        %p246 = pneg %p128
        %p247 = pneg %p125
        %p248 = pneg %p154
        %p249 = pneg %p151
        %s250 = sand.u32 %s141, 1
        %s251 = scalar_lea.sflag [#allocation4], %s250
        %s252 = sand.u32 %s141, 1
        %s253 = smul.addr %s252, 4
        %s254 = scalar_lea.vmem [#allocation7], %s253
        %v256 = vld [vmem:[%s224] sm:$0xf]
        %v257 = vld [vmem:[#allocation5] sm:$0xf]
        %v258 = vld [vmem:[#allocation5 + $0x4] sm:$0xf]
        %v259 = vld [vmem:[#allocation5 + $0x8] sm:$0xf]
        %v260 = vld [vmem:[#allocation5 + $0xc] sm:$0xf]
        %v261 = vld [vmem:[%s2] sm:$0x1]
        %v263 = vlaneseq
        %v264 = vshrl.u32 %v263, 7
        %v265 = vsub.s32 0, %v264
        %v266 = vrot.slane %v261, %v265
        %v272 = vunpack.c.l.b16 %v257
        %v273 = vunpack.c.l.b16 %v258
        %v274 = vunpack.c.l.b16 %v259
        %v275 = vunpack.c.l.b16 %v260
        %v276 = vpack.c.b16 %v273, %v272
        %v277 = vpack.c.b16 %v275, %v274
        %vm280 = vcmask 261120
        %v282 = vsel %vm280, %v256, 0
        %284 = vmatprep.subr.bf16.mxu0 0
        %285 = vmatpush1.bf16.msra.mxu0 %v276
        %286 = vmatprep.subr.bf16.mxu0 0
        %287 = vmatpush1.bf16.msra.mxu0 %v277
        %288 = vmatprep.subr.bf16.mxu0 0
        %289 = vmatpush1.bf16.msra.mxu0 0
        %290 = vmatprep.subr.bf16.mxu0 0
        %291 = vmatpush1.bf16.msra.mxu0 0
        %292 = vmatprep.subr.bf16.mxu0 0
        %293 = vmatpush1.bf16.msra.mxu0 0
        %294 = vmatprep.subr.bf16.mxu0 0
        %295 = vmatpush1.bf16.msra.mxu0 0
        %296 = vmatprep.subr.bf16.mxu0 0
        %297 = vmatpush1.bf16.msra.mxu0 0
        %298 = vmatprep.subr.bf16.mxu0 0
        %299 = vmatpush1.bf16.msra.mxu0 0
        %300 = vmatprep.subr.bf16.mxu0 0
        %301 = vmatpush1.bf16.msra.mxu0 0
        %302 = vmatprep.subr.bf16.mxu0 0
        %303 = vmatpush1.bf16.msra.mxu0 0
        %304 = vmatprep.subr.bf16.mxu0 0
        %305 = vmatpush1.bf16.msra.mxu0 0
        %306 = vmatprep.subr.bf16.mxu0 0
        %307 = vmatpush1.bf16.msra.mxu0 0
        %308 = vmatprep.subr.bf16.mxu0 0
        %309 = vmatpush1.bf16.msra.mxu0 0
        %310 = vmatprep.subr.bf16.mxu0 0
        %311 = vmatpush1.bf16.msra.mxu0 0
        %312 = vmatprep.subr.bf16.mxu0 0
        %313 = vmatpush1.bf16.msra.mxu0 0
        %314 = vmatprep.subr.bf16.mxu0 0
        %315 = vmatpush1.bf16.msra.mxu0 0
        %316 = vmatprep.mubr.bf16.mxu0 0
        %317 = vmatmul.mubr.bf16.gmra.mrb[0].mxu0 %v282
        %v318 = vpop.f32.mrb[0].mxu0
        %v319 = vadd.f32 %v266, %v318
        %v320 = vpop.f32.mrb[0].mxu0
        %v321 = vpop.f32.mrb[0].mxu0
        %v322 = vpop.f32.mrb[0].mxu0
        %323 = vdwg.mxu0
        %v324 = vmax.f32 %v319, 0.0
        %v325 = vsel %vm280, %v324, 0.0
        %326 = vadd.xlane.f32.xlu0 %v325
        %v327 = vpop.xlane.xlu0 %326
        %v328 = vmul.f32 %v324, %v324
        %v329 = vsel %vm280, %v328, 0.0
        %330 = vadd.xlane.f32.xlu0 %v329
        %v331 = vpop.xlane.xlu0 %330
        %v332 = vmul.f32 %v327, 0.03125
        %v333 = vmul.f32 %v331, 0.03125
        %v334 = vmul.f32 %v332, %v332
        %v335 = vsub.f32 %v333, %v334
        %v336 = vmax.f32 %v335, 0.0
        %v337 = vsub.f32 %v324, %v332
        %v338 = vadd.f32 %v336, 1e-05
        %v339 = vrsqrt.pop %v338
        %v340 = vmul.f32 %v337, %v339
        %v341 = vld [vmem:[%s3] sm:$0x1]
        %v343 = vlaneseq
        %v344 = vshrl.u32 %v343, 7
        %v345 = vsub.s32 0, %v344
        %v346 = vrot.slane %v341, %v345
        %v348 = vmul.f32 %v340, %v346
        %v349 = vld [vmem:[%s4] sm:$0x1]
        %v351 = vlaneseq
        %v352 = vshrl.u32 %v351, 7
        %v353 = vsub.s32 0, %v352
        %v354 = vrot.slane %v349, %v353
        %v356 = vadd.f32 %v348, %v354
        %v357 = vpack.c.bf16 %v356, %v356
        %vm358 = vcmask 257024
        %359 = vst.msk [vmem:[%s254] sm:$0xf] %vm358, %v357
        %s360 = sand.u32 %s141, 1
        %s361 = scalar_lea.sflag [#allocation4], %s360
        %s362 = sand.u32 %s141, 1
        %s363 = smul.addr %s362, 4
        %s364 = scalar_lea.vmem [#allocation7], %s363
        // Predicated region
        $region49: #{tpu_custom_call.1} parent=39 // pred_check
          %p365 = pneg %p151
        $region50: #{tpu_custom_call.1} parent=39 // pred_check_branch
          %367 = sbr.rel (%p365) target = $region52
        $region51: #{tpu_custom_call.1} parent=39 // pred_region
          %s369 = ssub.s32 64, 64
          %370 = vsyncadd %s361, %s369
          %s371 = smul.addr %s23, 64
          %s372 = scalar_lea.hbm %s5, %s371
          %s374 = sshll.u32 %s364, 4
          %s375 = int_to_ptr.vmem [resolvable:$true] %s374
          %377 = dma.vmem_to_hbm [thread:$0]  %s375, 64, %s372, %s361
        $region52: #{tpu_custom_call.1} parent=39 // pred_fallthru
          _
      $region40: #{tpu_custom_call.1} parent=5 // pred_fallthru
        _
      %p378 = scmp.le.s32.totalorder 2, %s18
      // Predicated region
      $region53: #{tpu_custom_call.1} parent=5 // pred_check
        %p379 = pneg %p378
      $region54: #{tpu_custom_call.1} parent=5 // pred_check_branch
        %381 = sbr.rel (%p379) target = $region56
      $region55: #{tpu_custom_call.1} parent=5 // pred_region
        %s382 = ssub.s32 %s18, 2
        // Predicated region
        $region57: #{tpu_custom_call.1} parent=55 // pred_check
          %p383 = pneg %p157
        $region58: #{tpu_custom_call.1} parent=55 // pred_check_branch
          %385 = sbr.rel (%p383) target = $region60
        $region59: #{tpu_custom_call.1} parent=55 // pred_region
          %s386 = sand.u32 %s142, 1
          %s387 = scalar_lea.sflag [#allocation4], %s386
          %s388 = sand.u32 %s142, 1
          %s389 = smul.addr %s388, 4
          %s390 = scalar_lea.vmem [#allocation7], %s389
          %391 = dma.done %s387, 64
        $region60: #{tpu_custom_call.1} parent=55 // pred_fallthru
          _
      $region56: #{tpu_custom_call.1} parent=5 // pred_fallthru
        _
    $region6: #{tpu_custom_call.1} parent=1 // loop_footer
      %s22 = sadd.s32 1, %s18
    $region7: #{tpu_custom_call.1} parent=1 // loop_footer_branch
      %17 = sbr.rel target = $region3
    $region8: #{tpu_custom_call.1} parent=1 // loop_exit
      _
    %392 = vsyncpa [#allocation3], 1
    %s393 = scalar_lea.sflag [#allocation3], 1
    %394 = vsyncpa %s393, 1
    %395 = vsyncpa [#allocation6], 1
    %396 = vsyncpa [#allocation4], 1
    %s397 = scalar_lea.sflag [#allocation4], 1
    %398 = vsyncpa %s397, 1

</llo_original>
